<compile_context>
chip_gen: v7x
topology: tpu7x:2x2x1
jax: 0.10.0
libtpu: 0.0.40
codegen_flags: <defaults>
</compile_context>

<pallas_src>
import functools

import jax
import jax.numpy as jnp
from jax.experimental import pallas as pl
from jax.experimental.pallas import tpu as pltpu


# ---------------------------------------------------------------------------
# Fused per-sequence kernel: grid = (B, T), hidden state carried in VMEM.
# ---------------------------------------------------------------------------
def _tgcn_fused_kernel(x_ref, adj_ref, w1_ref, b1_ref, w2h_ref, w2x_ref, b2_ref,
                       out_ref, h_ref, r_scr, u_scr):
    t = pl.program_id(1)

    @pl.when(t == 0)
    def _():
        # Fresh batch element: reset the carried hidden state.
        h_ref[...] = jnp.zeros_like(h_ref)

    N, H = h_ref.shape
    P = N // 2

    a = adj_ref[0, 0]          # (N, N)  bf16 adjacency for this (b, t)
    x = x_ref[0, 0]            # (N, 1)  f32 node features for this (b, t)
    h = h_ref[...]             # (N, H)  f32 carried hidden state

    # graph_conv1: sigmoid( (A @ [h | x]) @ W1_rot + b1 )
    #   x is concatenated LAST so h stays lane-aligned; W1's rows were rotated
    #   in the wrapper to match ([h-rows ; x-row]).  The A@x column rides for
    #   free inside the padded-lane MXU pass and is reused by graph_conv2.
    hx = jnp.concatenate([h, x], axis=1).astype(a.dtype)            # (N, H+1) bf16
    ac = jnp.dot(a, hx, preferred_element_type=jnp.float32)         # (N, H+1) f32
    g = jax.nn.sigmoid(
        jnp.dot(ac, w1_ref[...], preferred_element_type=jnp.float32)
        + b1_ref[...])                                               # (N, 2H)

    # torch.chunk splits the FLATTENED (N*2H) gate vector, which interleaves
    # gate rows with node rows:
    #   r[2m]   = g[m,   :H]   r[2m+1] = g[m,   H:]
    #   u[2m]   = g[P+m, :H]   u[2m+1] = g[P+m, H:]
    # Realize the interleave with sublane-strided stores into VMEM scratch
    # (store/XLU slots) instead of the old (N, N) permutation matmul (MXU).
    r_scr[pl.ds(0, P, stride=2), :] = g[:P, :H]
    r_scr[pl.ds(1, P, stride=2), :] = g[:P, H:]
    u_scr[pl.ds(0, P, stride=2), :] = g[P:, :H]
    u_scr[pl.ds(1, P, stride=2), :] = g[P:, H:]
    r = r_scr[...]                                                   # (N, H)
    u = u_scr[...]                                                   # (N, H)

    # graph_conv2: tanh( (A @ (r*h)) @ W2[1:] + (A@x) * W2[0:1] + b2 )
    arh = jnp.dot(a, (r * h).astype(a.dtype),
                  preferred_element_type=jnp.float32)                # (N, H)
    ax = ac[:, H:H + 1]                                              # (N, 1) = A @ x
    c = jnp.tanh(
        jnp.dot(arh, w2h_ref[...], preferred_element_type=jnp.float32)
        + ax * w2x_ref[...]                                          # VPU outer product
        + b2_ref[...])                                               # (N, H)

    # GRU update
    new_h = u * h + (1.0 - u) * c
    h_ref[...] = new_h

    @pl.when(t == pl.num_programs(1) - 1)
    def _():
        out_ref[0] = new_h


# ---------------------------------------------------------------------------
# Parameters (deterministic init mirroring the torch __init__)
# ---------------------------------------------------------------------------
def init_tgcn_params(key, hidden_dim):
    H = hidden_dim

    def xavier_uniform(k, shape):
        fan_in, fan_out = shape
        a = (6.0 / (fan_in + fan_out)) ** 0.5
        return jax.random.uniform(k, shape, jnp.float32, -a, a)

    k1, k2 = jax.random.split(key)
    W1 = xavier_uniform(k1, (H + 1, 2 * H))          # graph_conv1.weights
    b1 = jnp.full((1, 2 * H), 1.0, jnp.float32)      # graph_conv1.biases (bias=1.0)
    W2 = xavier_uniform(k2, (H + 1, H))              # graph_conv2.weights
    b2 = jnp.zeros((1, H), jnp.float32)              # graph_conv2.biases (bias=0.0)
    return {"W1": W1, "b1": b1, "W2": W2, "b2": b2}


# ---------------------------------------------------------------------------
# TGCN forward (Pallas path): one pallas_call for the whole sequence
# ---------------------------------------------------------------------------
@functools.partial(jax.jit, static_argnames=("hidden_dim",))
def tgcn_forward(inputs, adj, params, hidden_dim):
    B, T, N = inputs.shape
    H = hidden_dim
    assert N % 2 == 0, "flattened torch.chunk split requires an even node count"

    W1, b1 = params["W1"], params["b1"]
    W2, b2 = params["W2"], params["b2"]

    # Rotate W1's rows so they match the [h | x] (x last) concat in-kernel,
    # and pre-split W2 into its h-rows and x-row (all free, done once by XLA).
    W1r = jnp.concatenate([W1[1:], W1[:1]], axis=0)   # (H+1, 2H)
    W2h = W2[1:]                                      # (H, H)
    w2x = W2[0:1]                                     # (1, H)

    x4 = inputs[..., None]                            # (B, T, N, 1) f32
    adj_bf16 = adj.astype(jnp.bfloat16)               # halve the dominant HBM stream
    # TODO(synk): if the adjacency is time-invariant, pass (B, N, N) bf16 with
    # index_map (b, 0, 0) so it stays VMEM-resident across the whole T loop.

    flops_step = (2 * N * N * (H + 1)          # A @ [h | x]
                  + 2 * N * (H + 1) * 2 * H    # @ W1
                  + 2 * N * N * H              # A @ (r * h)
                  + 2 * N * H * H)             # @ W2[1:]
    cost = pl.CostEstimate(
        flops=B * T * flops_step,
        transcendentals=B * T * N * 3 * H,
        bytes_accessed=(B * T * (2 * N * N + 4 * N)          # bf16 A + f32 x per step
                        + 4 * B * N * H                      # output
                        + 4 * ((H + 1) * 2 * H + 2 * H + H * H + 2 * H)),
    )

    return pl.pallas_call(
        _tgcn_fused_kernel,
        out_shape=jax.ShapeDtypeStruct((B, N, H), jnp.float32),
        grid=(B, T),
        in_specs=[
            pl.BlockSpec((1, 1, N, 1), lambda b, t: (b, t, 0, 0)),   # x
            pl.BlockSpec((1, 1, N, N), lambda b, t: (b, t, 0, 0)),   # adjacency (bf16)
            pl.BlockSpec((H + 1, 2 * H), lambda b, t: (0, 0)),       # W1 (rotated)
            pl.BlockSpec((1, 2 * H), lambda b, t: (0, 0)),           # b1
            pl.BlockSpec((H, H), lambda b, t: (0, 0)),               # W2[1:]
            pl.BlockSpec((1, H), lambda b, t: (0, 0)),               # W2[0:1]
            pl.BlockSpec((1, H), lambda b, t: (0, 0)),               # b2
        ],
        out_specs=pl.BlockSpec((1, N, H), lambda b, t: (b, 0, 0)),
        scratch_shapes=[
            pltpu.VMEM((N, H), jnp.float32),   # carried hidden state h
            pltpu.VMEM((N, H), jnp.float32),   # r (interleave target)
            pltpu.VMEM((N, H), jnp.float32),   # u (interleave target)
        ],
        compiler_params=pltpu.CompilerParams(
            dimension_semantics=("parallel", "arbitrary"),
            # Production budget (N=2322, H=64, bf16 A): 2x10.8 MB A double-buffer
            # + ~2 MB scratches/weights — comfortably under v7x's 64 MiB VMEM.
            vmem_limit_bytes=64 * 1024 * 1024,
        ),
        cost_estimate=cost,
    )(x4, adj_bf16, W1r, b1, W2h, w2x, b2)


# ---------------------------------------------------------------------------
# Pure-JAX reference (literal transcription of the torch code) for validation.
# The adjacency matmul operands are cast to bf16 exactly like the kernel does,
# so the comparison isolates kernel bugs rather than precision policy.
# ---------------------------------------------------------------------------
def tgcn_reference(inputs, adj, params, hidden_dim):
    B, T, N = inputs.shape
    H = hidden_dim
    W1, b1, W2, b2 = params["W1"], params["b1"], params["W2"], params["b2"]
    hp = jax.lax.Precision.HIGHEST
    adj_bf16 = adj.astype(jnp.bfloat16)
    h = jnp.zeros((B, N * H), jnp.float32)
    for t in range(T):
        x = inputs[:, t, :]
        A = adj_bf16[:, t]

        def graph_conv(W, bb, hidden_flat):
            hid = hidden_flat.reshape(B, N, -1)
            concat = jnp.concatenate([x[..., None], hid], axis=2).astype(jnp.bfloat16)
            ac = jnp.einsum("bij,bjk->bik", A, concat,
                            preferred_element_type=jnp.float32)
            out = jnp.dot(ac.reshape(B * N, -1), W, precision=hp) + bb.reshape(-1)
            return out.reshape(B, N * W.shape[1])

        conc = jax.nn.sigmoid(graph_conv(W1, b1, h))
        r, u = conc[:, : N * H], conc[:, N * H:]
        c = jnp.tanh(graph_conv(W2, b2, r * h))
        h = u * h + (1.0 - u) * c
    return h.reshape(B, N, H)


# ---------------------------------------------------------------------------
if __name__ == "__main__":
    # Small shapes consistent with the forward pass (the real model hardcodes
    # num_nodes = 2322; the kernel is shape-generic).
    B, T, N, H = 2, 8, 32, 16

    key = jax.random.PRNGKey(0)
    kx, ka, kp = jax.random.split(key, 3)

    inputs = jax.random.normal(kx, (B, T, N), jnp.float32)
    adj = jax.random.uniform(ka, (B, T, N, N), jnp.float32)
    adj = adj / jnp.sum(adj, axis=-1, keepdims=True)  # tame dense per-(b,t) adjacency

    params = init_tgcn_params(kp, H)

    out = tgcn_forward(inputs, adj, params, H)
    out = jax.block_until_ready(out)

    ref = tgcn_reference(inputs, adj, params, H)
    assert out.shape == (B, N, H)
    assert jnp.allclose(out, ref, atol=1e-2, rtol=1e-2)

    print("KERNEL_OK")
</pallas_src>

<mosaic_0001>
module attributes {stable_mosaic.version = 11 : i64} {
  func.func @_tgcn_fused_kernel(%arg0: i32, %arg1: i32, %arg2: memref<1x1x32x1xf32, #tpu.memory_space<vmem>>, %arg3: memref<1x1x32x32xbf16, #tpu.memory_space<vmem>>, %arg4: memref<17x32xf32, #tpu.memory_space<vmem>>, %arg5: memref<1x32xf32, #tpu.memory_space<vmem>>, %arg6: memref<16x16xf32, #tpu.memory_space<vmem>>, %arg7: memref<1x16xf32, #tpu.memory_space<vmem>>, %arg8: memref<1x16xf32, #tpu.memory_space<vmem>>, %arg9: memref<1x32x16xf32, #tpu.memory_space<vmem>>, %arg10: memref<32x16xf32, #tpu.memory_space<vmem>>, %arg11: memref<32x16xf32, #tpu.memory_space<vmem>>, %arg12: memref<32x16xf32, #tpu.memory_space<vmem>>) attributes {dimension_semantics = [#tpu.dimension_semantics<parallel>, #tpu.dimension_semantics<arbitrary>], iteration_bounds = array<i64: 2, 8>, scalar_prefetch = 0 : i64, scratch_operands = 3 : i64, tpu.core_type = #tpu.core_type<tc>, window_params = [{transform_indices = @transform_0, window_bounds = array<i64: 1, 1, 32, 1>}, {transform_indices = @transform_1, window_bounds = array<i64: 1, 1, 32, 32>}, {pipeline_mode = #tpu.pipeline_mode<synchronous>, transform_indices = @transform_2, window_bounds = array<i64: 17, 32>}, {pipeline_mode = #tpu.pipeline_mode<synchronous>, transform_indices = @transform_3, window_bounds = array<i64: 1, 32>}, {pipeline_mode = #tpu.pipeline_mode<synchronous>, transform_indices = @transform_4, window_bounds = array<i64: 16, 16>}, {pipeline_mode = #tpu.pipeline_mode<synchronous>, transform_indices = @transform_5, window_bounds = array<i64: 1, 16>}, {pipeline_mode = #tpu.pipeline_mode<synchronous>, transform_indices = @transform_6, window_bounds = array<i64: 1, 16>}, {transform_indices = @transform_7, window_bounds = array<i64: 1, 32, 16>}]} {
    %c0_i32 = arith.constant 0 : i32
    %0 = arith.cmpi eq, %arg1, %c0_i32 : i32
    %1 = arith.extui %0 : i1 to i32
    %c0_i32_0 = arith.constant 0 : i32
    %2 = arith.cmpi ne, %1, %c0_i32_0 : i32
    scf.if %2 {
      %cst_39 = arith.constant 0.000000e+00 : f32
      %55 = vector.broadcast %cst_39 : f32 to vector<32x16xf32>
      %c0_40 = arith.constant 0 : index
      %c0_41 = arith.constant 0 : index
      %56 = vector.load %arg10[%c0_40, %c0_41] : memref<32x16xf32, #tpu.memory_space<vmem>>, vector<32x16xf32>
      tpu.vector_store %arg10[%c0_40, %c0_41], %55 {strides = array<i32>} : memref<32x16xf32, #tpu.memory_space<vmem>>, vector<32x16xf32>,
    } else {
    }
    %c0 = arith.constant 0 : index
    %c0_1 = arith.constant 0 : index
    %c0_2 = arith.constant 0 : index
    %c0_3 = arith.constant 0 : index
    %3 = vector.load %arg3[%c0, %c0_1, %c0_2, %c0_3] : memref<1x1x32x32xbf16, #tpu.memory_space<vmem>>, vector<1x1x32x32xbf16>
    %4 = vector.shape_cast %3 : vector<1x1x32x32xbf16> to vector<32x32xbf16>
    %c0_4 = arith.constant 0 : index
    %c0_5 = arith.constant 0 : index
    %c0_6 = arith.constant 0 : index
    %c0_7 = arith.constant 0 : index
    %5 = vector.load %arg2[%c0_4, %c0_5, %c0_6, %c0_7] : memref<1x1x32x1xf32, #tpu.memory_space<vmem>>, vector<1x1x32x1xf32>
    %6 = vector.shape_cast %5 : vector<1x1x32x1xf32> to vector<32x1xf32>
    %c0_8 = arith.constant 0 : index
    %c0_9 = arith.constant 0 : index
    %7 = vector.load %arg10[%c0_8, %c0_9] : memref<32x16xf32, #tpu.memory_space<vmem>>, vector<32x16xf32>
    %8 = tpu.concatenate %7, %6 in 1 : vector<32x16xf32>, vector<32x1xf32> -> vector<32x17xf32>
    %9 = arith.truncf %8 : vector<32x17xf32> to vector<32x17xbf16>
    %cst = arith.constant dense<0.000000e+00> : vector<32x17xf32>
    %10 = tpu.matmul %4, %9, %cst {dimension_numbers = #tpu.dot_dimension_numbers<[1], [0], [0], [1], [0, 0, 1, 1], [], []>} : vector<32x32xbf16>, vector<32x17xbf16>, vector<32x17xf32> -> vector<32x17xf32>
    %c0_10 = arith.constant 0 : index
    %c0_11 = arith.constant 0 : index
    %11 = vector.load %arg4[%c0_10, %c0_11] : memref<17x32xf32, #tpu.memory_space<vmem>>, vector<17x32xf32>
    %cst_12 = arith.constant dense<0.000000e+00> : vector<32x32xf32>
    %12 = tpu.matmul %10, %11, %cst_12 {dimension_numbers = #tpu.dot_dimension_numbers<[1], [0], [0], [1], [0, 0, 1, 1], [], []>} : vector<32x17xf32>, vector<17x32xf32>, vector<32x32xf32> -> vector<32x32xf32>
    %c0_13 = arith.constant 0 : index
    %c0_14 = arith.constant 0 : index
    %13 = vector.load %arg5[%c0_13, %c0_14] : memref<1x32xf32, #tpu.memory_space<vmem>>, vector<1x32xf32>
    %14 = vector.broadcast %13 : vector<1x32xf32> to vector<32x32xf32>
    %15 = arith.addf %12, %14 : vector<32x32xf32>
    %16 = arith.negf %15 : vector<32x32xf32>
    %17 = math.exp %16 : vector<32x32xf32>
    %cst_15 = arith.constant 1.000000e+00 : f32
    %18 = vector.broadcast %cst_15 : f32 to vector<32x32xf32>
    %19 = arith.addf %18, %17 : vector<32x32xf32>
    %20 = arith.divf %18, %19 : vector<32x32xf32>
    %21 = vector.extract_strided_slice %20 {offsets = [0, 0], sizes = [16, 16], strides = [1, 1]} : vector<32x32xf32> to vector<16x16xf32>
    %c0_16 = arith.constant 0 : index
    %c0_17 = arith.constant 0 : index
    %22 = tpu.strided_load %arg11[%c0_16, %c0_17] {strides = array<i32: 2, 1>} : memref<32x16xf32, #tpu.memory_space<vmem>>, vector<16x16xf32>
    tpu.strided_store %arg11[%c0_16, %c0_17], %21 {strides = array<i32: 2, 1>} : memref<32x16xf32, #tpu.memory_space<vmem>>, vector<16x16xf32>
    %23 = vector.extract_strided_slice %20 {offsets = [0, 16], sizes = [16, 16], strides = [1, 1]} : vector<32x32xf32> to vector<16x16xf32>
    %c1 = arith.constant 1 : index
    %c0_18 = arith.constant 0 : index
    %24 = tpu.strided_load %arg11[%c1, %c0_18] {strides = array<i32: 2, 1>} : memref<32x16xf32, #tpu.memory_space<vmem>>, vector<16x16xf32>
    tpu.strided_store %arg11[%c1, %c0_18], %23 {strides = array<i32: 2, 1>} : memref<32x16xf32, #tpu.memory_space<vmem>>, vector<16x16xf32>
    %25 = vector.extract_strided_slice %20 {offsets = [16, 0], sizes = [16, 16], strides = [1, 1]} : vector<32x32xf32> to vector<16x16xf32>
    %c0_19 = arith.constant 0 : index
    %c0_20 = arith.constant 0 : index
    %26 = tpu.strided_load %arg12[%c0_19, %c0_20] {strides = array<i32: 2, 1>} : memref<32x16xf32, #tpu.memory_space<vmem>>, vector<16x16xf32>
    tpu.strided_store %arg12[%c0_19, %c0_20], %25 {strides = array<i32: 2, 1>} : memref<32x16xf32, #tpu.memory_space<vmem>>, vector<16x16xf32>
    %27 = vector.extract_strided_slice %20 {offsets = [16, 16], sizes = [16, 16], strides = [1, 1]} : vector<32x32xf32> to vector<16x16xf32>
    %c1_21 = arith.constant 1 : index
    %c0_22 = arith.constant 0 : index
    %28 = tpu.strided_load %arg12[%c1_21, %c0_22] {strides = array<i32: 2, 1>} : memref<32x16xf32, #tpu.memory_space<vmem>>, vector<16x16xf32>
    tpu.strided_store %arg12[%c1_21, %c0_22], %27 {strides = array<i32: 2, 1>} : memref<32x16xf32, #tpu.memory_space<vmem>>, vector<16x16xf32>
    %c0_23 = arith.constant 0 : index
    %c0_24 = arith.constant 0 : index
    %29 = vector.load %arg11[%c0_23, %c0_24] : memref<32x16xf32, #tpu.memory_space<vmem>>, vector<32x16xf32>
    %c0_25 = arith.constant 0 : index
    %c0_26 = arith.constant 0 : index
    %30 = vector.load %arg12[%c0_25, %c0_26] : memref<32x16xf32, #tpu.memory_space<vmem>>, vector<32x16xf32>
    %31 = arith.mulf %29, %7 : vector<32x16xf32>
    %32 = arith.truncf %31 : vector<32x16xf32> to vector<32x16xbf16>
    %cst_27 = arith.constant dense<0.000000e+00> : vector<32x16xf32>
    %33 = tpu.matmul %4, %32, %cst_27 {dimension_numbers = #tpu.dot_dimension_numbers<[1], [0], [0], [1], [0, 0, 1, 1], [], []>} : vector<32x32xbf16>, vector<32x16xbf16>, vector<32x16xf32> -> vector<32x16xf32>
    %34 = vector.extract_strided_slice %10 {offsets = [0, 16], sizes = [32, 1], strides = [1, 1]} : vector<32x17xf32> to vector<32x1xf32>
    %c0_28 = arith.constant 0 : index
    %c0_29 = arith.constant 0 : index
    %35 = vector.load %arg6[%c0_28, %c0_29] : memref<16x16xf32, #tpu.memory_space<vmem>>, vector<16x16xf32>
    %cst_30 = arith.constant dense<0.000000e+00> : vector<32x16xf32>
    %36 = tpu.matmul %33, %35, %cst_30 {dimension_numbers = #tpu.dot_dimension_numbers<[1], [0], [0], [1], [0, 0, 1, 1], [], []>} : vector<32x16xf32>, vector<16x16xf32>, vector<32x16xf32> -> vector<32x16xf32>
    %c0_31 = arith.constant 0 : index
    %c0_32 = arith.constant 0 : index
    %37 = vector.load %arg7[%c0_31, %c0_32] : memref<1x16xf32, #tpu.memory_space<vmem>>, vector<1x16xf32>
    %38 = vector.broadcast %34 : vector<32x1xf32> to vector<32x16xf32>
    %39 = vector.broadcast %37 : vector<1x16xf32> to vector<32x16xf32>
    %40 = arith.mulf %38, %39 : vector<32x16xf32>
    %41 = arith.addf %36, %40 : vector<32x16xf32>
    %c0_33 = arith.constant 0 : index
    %c0_34 = arith.constant 0 : index
    %42 = vector.load %arg8[%c0_33, %c0_34] : memref<1x16xf32, #tpu.memory_space<vmem>>, vector<1x16xf32>
    %43 = vector.broadcast %42 : vector<1x16xf32> to vector<32x16xf32>
    %44 = arith.addf %41, %43 : vector<32x16xf32>
    %45 = math.tanh %44 : vector<32x16xf32>
    %46 = arith.mulf %30, %7 : vector<32x16xf32>
    %cst_35 = arith.constant 1.000000e+00 : f32
    %47 = vector.broadcast %cst_35 : f32 to vector<32x16xf32>
    %48 = arith.subf %47, %30 : vector<32x16xf32>
    %49 = arith.mulf %48, %45 : vector<32x16xf32>
    %50 = arith.addf %46, %49 : vector<32x16xf32>
    %c0_36 = arith.constant 0 : index
    %c0_37 = arith.constant 0 : index
    %51 = vector.load %arg10[%c0_36, %c0_37] : memref<32x16xf32, #tpu.memory_space<vmem>>, vector<32x16xf32>
    tpu.vector_store %arg10[%c0_36, %c0_37], %50 {strides = array<i32>} : memref<32x16xf32, #tpu.memory_space<vmem>>, vector<32x16xf32>,
    %c7_i32 = arith.constant 7 : i32
    %52 = arith.cmpi eq, %arg1, %c7_i32 : i32
    %53 = arith.extui %52 : i1 to i32
    %c0_i32_38 = arith.constant 0 : i32
    %54 = arith.cmpi ne, %53, %c0_i32_38 : i32
    scf.if %54 {
      %c0_39 = arith.constant 0 : index
      %c0_40 = arith.constant 0 : index
      %c0_41 = arith.constant 0 : index
      %55 = vector.load %arg9[%c0_39, %c0_40, %c0_41] : memref<1x32x16xf32, #tpu.memory_space<vmem>>, vector<1x32x16xf32>
      %56 = vector.shape_cast %55 : vector<1x32x16xf32> to vector<32x16xf32>
      %57 = vector.shape_cast %50 : vector<32x16xf32> to vector<1x32x16xf32>
      tpu.vector_store %arg9[%c0_39, %c0_40, %c0_41], %57 {strides = array<i32>} : memref<1x32x16xf32, #tpu.memory_space<vmem>>, vector<1x32x16xf32>,
    } else {
    }
    return
  }
  func.func @transform_0(%arg0: i32, %arg1: i32) -> (i32, i32, i32, i32) {
    %c0_i32 = arith.constant 0 : i32
    %c0_i32_0 = arith.constant 0 : i32
    %c0_i32_1 = arith.constant 0 : i32
    return %arg0, %arg1, %c0_i32, %c0_i32_0 : i32, i32, i32, i32
  }
  func.func @transform_1(%arg0: i32, %arg1: i32) -> (i32, i32, i32, i32) {
    %c0_i32 = arith.constant 0 : i32
    %c0_i32_0 = arith.constant 0 : i32
    %c0_i32_1 = arith.constant 0 : i32
    return %arg0, %arg1, %c0_i32, %c0_i32_0 : i32, i32, i32, i32
  }
  func.func @transform_2(%arg0: i32, %arg1: i32) -> (i32, i32) {
    %c0_i32 = arith.constant 0 : i32
    %c0_i32_0 = arith.constant 0 : i32
    %c0_i32_1 = arith.constant 0 : i32
    return %c0_i32, %c0_i32_0 : i32, i32
  }
  func.func @transform_3(%arg0: i32, %arg1: i32) -> (i32, i32) {
    %c0_i32 = arith.constant 0 : i32
    %c0_i32_0 = arith.constant 0 : i32
    %c0_i32_1 = arith.constant 0 : i32
    return %c0_i32, %c0_i32_0 : i32, i32
  }
  func.func @transform_4(%arg0: i32, %arg1: i32) -> (i32, i32) {
    %c0_i32 = arith.constant 0 : i32
    %c0_i32_0 = arith.constant 0 : i32
    %c0_i32_1 = arith.constant 0 : i32
    return %c0_i32, %c0_i32_0 : i32, i32
  }
  func.func @transform_5(%arg0: i32, %arg1: i32) -> (i32, i32) {
    %c0_i32 = arith.constant 0 : i32
    %c0_i32_0 = arith.constant 0 : i32
    %c0_i32_1 = arith.constant 0 : i32
    return %c0_i32, %c0_i32_0 : i32, i32
  }
  func.func @transform_6(%arg0: i32, %arg1: i32) -> (i32, i32) {
    %c0_i32 = arith.constant 0 : i32
    %c0_i32_0 = arith.constant 0 : i32
    %c0_i32_1 = arith.constant 0 : i32
    return %c0_i32, %c0_i32_0 : i32, i32
  }
  func.func @transform_7(%arg0: i32, %arg1: i32) -> (i32, i32, i32) {
    %c0_i32 = arith.constant 0 : i32
    %c0_i32_0 = arith.constant 0 : i32
    %c0_i32_1 = arith.constant 0 : i32
    return %arg0, %c0_i32, %c0_i32_0 : i32, i32, i32
  }
}

</mosaic_0001>

<llo_original>
// kernel: tgcn_forward.1
$region0: #{tgcn_forward.1}
  #allocation0 [shape = 'u32[]', space=smem, size = 0x4, offset = 0x4, fixed_abs, tag = 'smem constant byte address 0x4 - core index']
  #allocation1 [shape = 'u32[144,128]{1,0:T(1,128)}', space=vmem, size = 0x12000, scoped, tag = 'internal scratch']
  #allocation2 [shape = 'f32[32,16]{1,0:T(8,128)}', space=vmem, size = 0x4000, scoped, tag = 'scratch operand']
  #allocation3 [shape = 'f32[32,16]{1,0:T(8,128)}', space=vmem, size = 0x4000, scoped, tag = 'scratch operand']
  #allocation4 [shape = 'f32[32,16]{1,0:T(8,128)}', space=vmem, size = 0x4000, scoped, tag = 'scratch operand']
  %s0 = inlined_call_operand.hbm [shape: f32[2,8,32,1], index: 0, kind: input, shape index: {}]
  %s1 = inlined_call_operand.hbm [shape: bf16[2,8,32,32], index: 1, kind: input, shape index: {}]
  %s2 = inlined_call_operand.hbm [shape: f32[17,32], index: 2, kind: input, shape index: {}]
  %s3 = inlined_call_operand.hbm [shape: f32[1,32], index: 3, kind: input, shape index: {}]
  %s4 = inlined_call_operand.hbm [shape: f32[16,16], index: 4, kind: input, shape index: {}]
  %s5 = inlined_call_operand.hbm [shape: f32[1,16], index: 5, kind: input, shape index: {}]
  %s6 = inlined_call_operand.hbm [shape: f32[1,16], index: 6, kind: input, shape index: {}]
  %s7 = inlined_call_operand.hbm [shape: f32[2,32,16], index: 7, kind: output, shape index: {}]
  %s8 = sld [smem:[#allocation0]]
  $region97: #{tgcn_forward.1} parent=0
    _
  %s10 = ssub.s32 1, %s8
  %s11 = scalar_select 0, %s10, %s8
  $region1: #{tgcn_forward.1} parent=0
    #allocation5 [shape = 'u8[32768]{0}', space=vmem, size = 0x8000, scoped, tag = 'input window, operand 0']
    #allocation6 [shape = 's32[2]{0}', space=sflag, size = 0x8, scoped, tag = 'scoped memory for tgcn_forward.1']
    #allocation7 [shape = 's32[2]{0}', space=sflag, size = 0x8, scoped, tag = 'scoped memory for tgcn_forward.1']
    #allocation8 [shape = 'u8[16384]{0}', space=vmem, size = 0x4000, scoped, tag = 'input window, operand 1']
    #allocation9 [shape = 's32[2]{0}', space=sflag, size = 0x8, scoped, tag = 'scoped memory for tgcn_forward.1']
    #allocation10 [shape = 'u8[12288]{0}', space=vmem, size = 0x3000, scoped, tag = 'input window, operand 2, single buffered']
    #allocation11 [shape = 'u8[512]{0}', space=vmem, size = 0x400, scoped, tag = 'input window, operand 3, single buffered']
    #allocation12 [shape = 's32[1]{0}', space=sflag, size = 0x4, scoped, tag = 'scoped memory for tgcn_forward.1']
    #allocation13 [shape = 'u8[8192]{0}', space=vmem, size = 0x2000, scoped, tag = 'input window, operand 4, single buffered']
    #allocation14 [shape = 'u8[512]{0}', space=vmem, size = 0x400, scoped, tag = 'input window, operand 5, single buffered']
    #allocation15 [shape = 's32[1]{0}', space=sflag, size = 0x4, scoped, tag = 'scoped memory for tgcn_forward.1']
    #allocation16 [shape = 'u8[512]{0}', space=vmem, size = 0x400, scoped, tag = 'input window, operand 6, single buffered']
    #allocation17 [shape = 'u8[32768]{0}', space=vmem, size = 0x8000, scoped, tag = 'output window, operand 0']
    %12 = vsyncpa [#allocation6], 0
    %s13 = scalar_lea.sflag [#allocation6], 1
    %14 = vsyncpa %s13, 0
    %15 = vsyncpa [#allocation9], 0
    %s16 = scalar_lea.sflag [#allocation9], 1
    %17 = vsyncpa %s16, 0
    %18 = vsyncpa [#allocation12], 0
    %19 = vsyncpa [#allocation15], 0
    %20 = vsyncpa [#allocation7], 0
    %s21 = scalar_lea.sflag [#allocation7], 1
    %22 = vsyncpa %s21, 0
    loop: start=0, step=1, limit=18
    $region2: #{tgcn_forward.1} parent=1 // loop_pre_header
      _
    $region3: #{tgcn_forward.1} parent=1 // loop_header
      %s24 = sphi 0, %s28
      %p25 = scmp.ge.s32.totalorder %s24, 18
      %s31 = sphi 0, %s43
      %s32 = sphi 0, %s39
      %s33 = sphi 0, %s31
      %s34 = sphi 0, %s32
      %s35 = sphi 0, %s33
      %s36 = sphi 0, %s34
      %s48 = sphi 0, %s50
      %s51 = sphi 0, %s48
      %s52 = sphi 0, %s51
      %s68 = sphi 0, %s52
      %s76 = sphi 0, %s78
      %s79 = sphi 0, %s76
      %s80 = sphi 0, %s79
      %s96 = sphi 0, %s80
      %s100 = sphi 0, %s100
      %s102 = sphi 0, %s100
      %s103 = sphi 0, %s102
      %s117 = sphi 0, %s103
      %s121 = sphi 0, %s121
      %s123 = sphi 0, %s121
      %s124 = sphi 0, %s123
      %s138 = sphi 0, %s124
      %s142 = sphi 0, %s142
      %s144 = sphi 0, %s142
      %s145 = sphi 0, %s144
      %s159 = sphi 0, %s145
      %s163 = sphi 0, %s163
      %s165 = sphi 0, %s163
      %s166 = sphi 0, %s165
      %s180 = sphi 0, %s166
      %s184 = sphi 0, %s184
      %s186 = sphi 0, %s184
      %s187 = sphi 0, %s186
      %s201 = sphi 0, %s187
      %s207 = sphi 0, %s209
      %s210 = sphi 0, %s207
      %s211 = sphi 0, %s210
      %s227 = sphi 0, %s211
    $region4: #{tgcn_forward.1} parent=1 // loop_header_branch
      %27 = sbr.rel (%p25) target = $region8
    $region5: #{tgcn_forward.1} parent=1 // loop_body
      %s29 = ssub.s32 %s24, 1
      %s30 = ssub.s32 %s24, 2
      %s37 = sadd.s32 1, %s32
      %p38 = scmp.ge.s32.totalorder %s37, 8
      %s39 = scalar_select %p38, 0, %s37
      %s40 = sadd.s32 1, %s31
      %s41 = scalar_select %p38, %s40, %s31
      %p42 = scmp.ge.s32.totalorder %s41, 2
      %s43 = scalar_select %p42, 0, %s41
      %s44 = ssub.s32 %s31, %s43
      %s45 = ssub.s32 %s32, %s39
      %s46 = sor.u32 %s44, %s45
      %p47 = scmp.eq.s32.totalorder %s46, 0
      %s49 = sadd.s32 %s48, 1
      %s50 = scalar_select %p47, %s48, %s49
      %p53 = pneg %p47
      %p54 = scmp.eq.s32.totalorder %s24, 15
      %p55 = por %p53, %p54
      %p56 = scmp.ne.s32.totalorder %s48, %s51
      %p57 = scmp.eq.s32.totalorder %s24, 0
      %p58 = por %p56, %p57
      %p59 = scmp.ne.s32.totalorder %s48, %s51
      %p60 = scmp.eq.s32.totalorder %s29, 15
      %p61 = por %p59, %p60
      %p62 = scmp.ne.s32.totalorder %s51, %s52
      %p63 = scmp.eq.s32.totalorder %s29, 0
      %p64 = por %p62, %p63
      %p65 = scmp.ne.s32.totalorder %s51, %s52
      %p66 = scmp.eq.s32.totalorder %s30, 15
      %p67 = por %p65, %p66
      %p69 = scmp.ne.s32.totalorder %s52, %s68
      %p70 = scmp.eq.s32.totalorder %s30, 0
      %p71 = por %p69, %p70
      %s72 = ssub.s32 %s31, %s43
      %s73 = ssub.s32 %s32, %s39
      %s74 = sor.u32 %s72, %s73
      %p75 = scmp.eq.s32.totalorder %s74, 0
      %s77 = sadd.s32 %s76, 1
      %s78 = scalar_select %p75, %s76, %s77
      %p81 = pneg %p75
      %p82 = scmp.eq.s32.totalorder %s24, 15
      %p83 = por %p81, %p82
      %p84 = scmp.ne.s32.totalorder %s76, %s79
      %p85 = scmp.eq.s32.totalorder %s24, 0
      %p86 = por %p84, %p85
      %p87 = scmp.ne.s32.totalorder %s76, %s79
      %p88 = scmp.eq.s32.totalorder %s29, 15
      %p89 = por %p87, %p88
      %p90 = scmp.ne.s32.totalorder %s79, %s80
      %p91 = scmp.eq.s32.totalorder %s29, 0
      %p92 = por %p90, %p91
      %p93 = scmp.ne.s32.totalorder %s79, %s80
      %p94 = scmp.eq.s32.totalorder %s30, 15
      %p95 = por %p93, %p94
      %p97 = scmp.ne.s32.totalorder %s80, %s96
      %p98 = scmp.eq.s32.totalorder %s30, 0
      %p99 = por %p97, %p98
      %s101 = sadd.s32 %s100, 1
      %p104 = scmp.eq.s32.totalorder %s24, 15
      %p105 = scmp.ne.s32.totalorder %s100, %s102
      %p106 = scmp.eq.s32.totalorder %s24, 0
      %p107 = por %p105, %p106
      %p108 = scmp.ne.s32.totalorder %s100, %s102
      %p109 = scmp.eq.s32.totalorder %s29, 15
      %p110 = por %p108, %p109
      %p111 = scmp.ne.s32.totalorder %s102, %s103
      %p112 = scmp.eq.s32.totalorder %s29, 0
      %p113 = por %p111, %p112
      %p114 = scmp.ne.s32.totalorder %s102, %s103
      %p115 = scmp.eq.s32.totalorder %s30, 15
      %p116 = por %p114, %p115
      %p118 = scmp.ne.s32.totalorder %s103, %s117
      %p119 = scmp.eq.s32.totalorder %s30, 0
      %p120 = por %p118, %p119
      %s122 = sadd.s32 %s121, 1
      %p125 = scmp.eq.s32.totalorder %s24, 15
      %p126 = scmp.ne.s32.totalorder %s121, %s123
      %p127 = scmp.eq.s32.totalorder %s24, 0
      %p128 = por %p126, %p127
      %p129 = scmp.ne.s32.totalorder %s121, %s123
      %p130 = scmp.eq.s32.totalorder %s29, 15
      %p131 = por %p129, %p130
      %p132 = scmp.ne.s32.totalorder %s123, %s124
      %p133 = scmp.eq.s32.totalorder %s29, 0
      %p134 = por %p132, %p133
      %p135 = scmp.ne.s32.totalorder %s123, %s124
      %p136 = scmp.eq.s32.totalorder %s30, 15
      %p137 = por %p135, %p136
      %p139 = scmp.ne.s32.totalorder %s124, %s138
      %p140 = scmp.eq.s32.totalorder %s30, 0
      %p141 = por %p139, %p140
      %s143 = sadd.s32 %s142, 1
      %p146 = scmp.eq.s32.totalorder %s24, 15
      %p147 = scmp.ne.s32.totalorder %s142, %s144
      %p148 = scmp.eq.s32.totalorder %s24, 0
      %p149 = por %p147, %p148
      %p150 = scmp.ne.s32.totalorder %s142, %s144
      %p151 = scmp.eq.s32.totalorder %s29, 15
      %p152 = por %p150, %p151
      %p153 = scmp.ne.s32.totalorder %s144, %s145
      %p154 = scmp.eq.s32.totalorder %s29, 0
      %p155 = por %p153, %p154
      %p156 = scmp.ne.s32.totalorder %s144, %s145
      %p157 = scmp.eq.s32.totalorder %s30, 15
      %p158 = por %p156, %p157
      %p160 = scmp.ne.s32.totalorder %s145, %s159
      %p161 = scmp.eq.s32.totalorder %s30, 0
      %p162 = por %p160, %p161
      %s164 = sadd.s32 %s163, 1
      %p167 = scmp.eq.s32.totalorder %s24, 15
      %p168 = scmp.ne.s32.totalorder %s163, %s165
      %p169 = scmp.eq.s32.totalorder %s24, 0
      %p170 = por %p168, %p169
      %p171 = scmp.ne.s32.totalorder %s163, %s165
      %p172 = scmp.eq.s32.totalorder %s29, 15
      %p173 = por %p171, %p172
      %p174 = scmp.ne.s32.totalorder %s165, %s166
      %p175 = scmp.eq.s32.totalorder %s29, 0
      %p176 = por %p174, %p175
      %p177 = scmp.ne.s32.totalorder %s165, %s166
      %p178 = scmp.eq.s32.totalorder %s30, 15
      %p179 = por %p177, %p178
      %p181 = scmp.ne.s32.totalorder %s166, %s180
      %p182 = scmp.eq.s32.totalorder %s30, 0
      %p183 = por %p181, %p182
      %s185 = sadd.s32 %s184, 1
      %p188 = scmp.eq.s32.totalorder %s24, 15
      %p189 = scmp.ne.s32.totalorder %s184, %s186
      %p190 = scmp.eq.s32.totalorder %s24, 0
      %p191 = por %p189, %p190
      %p192 = scmp.ne.s32.totalorder %s184, %s186
      %p193 = scmp.eq.s32.totalorder %s29, 15
      %p194 = por %p192, %p193
      %p195 = scmp.ne.s32.totalorder %s186, %s187
      %p196 = scmp.eq.s32.totalorder %s29, 0
      %p197 = por %p195, %p196
      %p198 = scmp.ne.s32.totalorder %s186, %s187
      %p199 = scmp.eq.s32.totalorder %s30, 15
      %p200 = por %p198, %p199
      %p202 = scmp.ne.s32.totalorder %s187, %s201
      %p203 = scmp.eq.s32.totalorder %s30, 0
      %p204 = por %p202, %p203
      %s205 = ssub.s32 %s31, %s43
      %p206 = scmp.eq.s32.totalorder %s205, 0
      %s208 = sadd.s32 %s207, 1
      %s209 = scalar_select %p206, %s207, %s208
      %p212 = pneg %p206
      %p213 = scmp.eq.s32.totalorder %s24, 15
      %p214 = por %p212, %p213
      %p215 = scmp.ne.s32.totalorder %s207, %s210
      %p216 = scmp.eq.s32.totalorder %s24, 0
      %p217 = por %p215, %p216
      %p218 = scmp.ne.s32.totalorder %s207, %s210
      %p219 = scmp.eq.s32.totalorder %s29, 15
      %p220 = por %p218, %p219
      %p221 = scmp.ne.s32.totalorder %s210, %s211
      %p222 = scmp.eq.s32.totalorder %s29, 0
      %p223 = por %p221, %p222
      %p224 = scmp.ne.s32.totalorder %s210, %s211
      %p225 = scmp.eq.s32.totalorder %s30, 15
      %p226 = por %p224, %p225
      %p228 = scmp.ne.s32.totalorder %s211, %s227
      %p229 = scmp.eq.s32.totalorder %s30, 0
      %p230 = por %p228, %p229
      %p231 = scmp.le.s32.totalorder 1, %s24
      %p232 = scmp.lt.s32.totalorder %s24, 17
      %p233 = pnand %p231, %p232
      %p234 = pneg %p233
      // Predicated region
      $region9: #{tgcn_forward.1} parent=5 // pred_check
        _
      $region10: #{tgcn_forward.1} parent=5 // pred_check_branch
        %236 = sbr.rel (%p233) target = $region12
      $region11: #{tgcn_forward.1} parent=5 // pred_region
        %s237 = ssub.s32 %s24, 1
        // Predicated region
        $region13: #{tgcn_forward.1} parent=11 // pred_check
          %p238 = pneg %p113
        $region14: #{tgcn_forward.1} parent=11 // pred_check_branch
          %240 = sbr.rel (%p238) target = $region16
        $region15: #{tgcn_forward.1} parent=11 // pred_region
          %s242 = ssub.s32 384, 384
          %243 = vsyncadd [#allocation9], %s242
          %s244 = sshll.u32 [#allocation10], 4
          %s245 = int_to_ptr.vmem [resolvable:$true] %s244
          %250 = dma.hbm_to_vmem [thread:$0]  %s2, 384, %s245, [#allocation9], 128, 128, 8
        $region16: #{tgcn_forward.1} parent=11 // pred_fallthru
          _
        // Predicated region
        $region17: #{tgcn_forward.1} parent=11 // pred_check
          %p251 = pneg %p134
        $region18: #{tgcn_forward.1} parent=11 // pred_check_branch
          %253 = sbr.rel (%p251) target = $region20
        $region19: #{tgcn_forward.1} parent=11 // pred_region
          %s255 = ssub.s32 16, 16
          %256 = vsyncadd [#allocation12], %s255
          %s258 = sshll.u32 [#allocation11], 4
          %s259 = int_to_ptr.vmem [resolvable:$true] %s258
          %261 = dma.hbm_to_vmem [thread:$0]  %s3, 16, %s259, [#allocation12]
        $region20: #{tgcn_forward.1} parent=11 // pred_fallthru
          _
        // Predicated region
        $region21: #{tgcn_forward.1} parent=11 // pred_check
          %p262 = pneg %p155
        $region22: #{tgcn_forward.1} parent=11 // pred_check_branch
          %264 = sbr.rel (%p262) target = $region24
        $region23: #{tgcn_forward.1} parent=11 // pred_region
          %s266 = ssub.s32 256, 256
          %267 = vsyncadd [#allocation12], %s266
          %s268 = sshll.u32 [#allocation13], 4
          %s269 = int_to_ptr.vmem [resolvable:$true] %s268
          %274 = dma.hbm_to_vmem [thread:$0]  %s4, 256, %s269, [#allocation12], 128, 128, 8
        $region24: #{tgcn_forward.1} parent=11 // pred_fallthru
          _
        // Predicated region
        $region25: #{tgcn_forward.1} parent=11 // pred_check
          %p275 = pneg %p176
        $region26: #{tgcn_forward.1} parent=11 // pred_check_branch
          %277 = sbr.rel (%p275) target = $region28
        $region27: #{tgcn_forward.1} parent=11 // pred_region
          %s279 = ssub.s32 16, 16
          %280 = vsyncadd [#allocation15], %s279
          %s282 = sshll.u32 [#allocation14], 4
          %s283 = int_to_ptr.vmem [resolvable:$true] %s282
          %285 = dma.hbm_to_vmem [thread:$0]  %s5, 16, %s283, [#allocation15]
        $region28: #{tgcn_forward.1} parent=11 // pred_fallthru
          _
        // Predicated region
        $region29: #{tgcn_forward.1} parent=11 // pred_check
          %p286 = pneg %p197
        $region30: #{tgcn_forward.1} parent=11 // pred_check_branch
          %288 = sbr.rel (%p286) target = $region32
        $region31: #{tgcn_forward.1} parent=11 // pred_region
          %s290 = ssub.s32 16, 16
          %291 = vsyncadd [#allocation15], %s290
          %s293 = sshll.u32 [#allocation16], 4
          %s294 = int_to_ptr.vmem [resolvable:$true] %s293
          %296 = dma.hbm_to_vmem [thread:$0]  %s6, 16, %s294, [#allocation15]
        $region32: #{tgcn_forward.1} parent=11 // pred_fallthru
          _
      $region12: #{tgcn_forward.1} parent=5 // pred_fallthru
        _
      %p297 = scmp.lt.s32.totalorder %s24, 16
      // Predicated region
      $region33: #{tgcn_forward.1} parent=5 // pred_check
        %p298 = pneg %p297
      $region34: #{tgcn_forward.1} parent=5 // pred_check_branch
        %300 = sbr.rel (%p298) target = $region36
      $region35: #{tgcn_forward.1} parent=5 // pred_region
        // Predicated region
        $region37: #{tgcn_forward.1} parent=35 // pred_check
          %p301 = pneg %p58
        $region38: #{tgcn_forward.1} parent=35 // pred_check_branch
          %303 = sbr.rel (%p301) target = $region40
        $region39: #{tgcn_forward.1} parent=35 // pred_region
          %s304 = sand.u32 %s48, 1
          %s305 = scalar_lea.sflag [#allocation6], %s304
          %s306 = sand.u32 %s48, 1
          %s307 = smul.addr %s306, 32
          %s308 = scalar_lea.vmem [#allocation5], %s307
          %s310 = ssub.s32 512, 512
          %311 = vsyncadd %s305, %s310
          %s312 = smul.addr %s32, 4
          %s313 = smul.addr %s31, 32
          %s314 = sadd.s32 %s312, %s313
          %s315 = smul.addr %s314, 128
          %s316 = scalar_lea.hbm %s0, %s315
          %s317 = sshll.u32 %s308, 4
          %s318 = int_to_ptr.vmem [resolvable:$true] %s317
          %323 = dma.hbm_to_vmem [thread:$0]  %s316, 512, %s318, %s305, 128, 128, 8
        $region40: #{tgcn_forward.1} parent=35 // pred_fallthru
          _
        // Predicated region
        $region41: #{tgcn_forward.1} parent=35 // pred_check
          %p324 = pneg %p86
        $region42: #{tgcn_forward.1} parent=35 // pred_check_branch
          %326 = sbr.rel (%p324) target = $region44
        $region43: #{tgcn_forward.1} parent=35 // pred_region
          %s327 = sand.u32 %s24, 1
          %s328 = scalar_lea.sflag [#allocation9], %s327
          %s329 = sand.u32 %s76, 1
          %s330 = smul.addr %s329, 16
          %s331 = scalar_lea.vmem [#allocation8], %s330
          %s333 = ssub.s32 256, 256
          %334 = vsyncadd %s328, %s333
          %s335 = smul.addr %s32, 4
          %s336 = smul.addr %s31, 32
          %s337 = sadd.s32 %s335, %s336
          %s338 = smul.addr %s337, 64
          %s339 = scalar_lea.hbm %s1, %s338
          %s340 = sshll.u32 %s331, 4
          %s341 = int_to_ptr.vmem [resolvable:$true] %s340
          %346 = dma.hbm_to_vmem [thread:$0]  %s339, 256, %s341, %s328, 64, 64, 4
        $region44: #{tgcn_forward.1} parent=35 // pred_fallthru
          _
      $region36: #{tgcn_forward.1} parent=5 // pred_fallthru
        _
      %p347 = scmp.le.s32.totalorder 1, %s24
      %p348 = scmp.lt.s32.totalorder %s24, 17
      %p349 = pnand %p347, %p348
      %p350 = pneg %p349
      // Predicated region
      $region45: #{tgcn_forward.1} parent=5 // pred_check
        _
      $region46: #{tgcn_forward.1} parent=5 // pred_check_branch
        %352 = sbr.rel (%p349) target = $region48
      $region47: #{tgcn_forward.1} parent=5 // pred_region
        %s353 = ssub.s32 %s24, 1
        %s354 = sand.u32 %s51, 1
        %s355 = scalar_lea.sflag [#allocation6], %s354
        %s356 = sand.u32 %s51, 1
        %s357 = smul.addr %s356, 32
        %s358 = scalar_lea.vmem [#allocation5], %s357
        // Predicated region
        $region49: #{tgcn_forward.1} parent=47 // pred_check
          %p359 = pneg %p64
        $region50: #{tgcn_forward.1} parent=47 // pred_check_branch
          %361 = sbr.rel (%p359) target = $region52
        $region51: #{tgcn_forward.1} parent=47 // pred_region
          %362 = dma.done %s355, 512
        $region52: #{tgcn_forward.1} parent=47 // pred_fallthru
          _
        %s363 = sand.u32 %s29, 1
        %s364 = scalar_lea.sflag [#allocation9], %s363
        %s365 = sand.u32 %s79, 1
        %s366 = smul.addr %s365, 16
        %s367 = scalar_lea.vmem [#allocation8], %s366
        // Predicated region
        $region53: #{tgcn_forward.1} parent=47 // pred_check
          %p368 = pneg %p92
        $region54: #{tgcn_forward.1} parent=47 // pred_check_branch
          %370 = sbr.rel (%p368) target = $region56
        $region55: #{tgcn_forward.1} parent=47 // pred_region
          %371 = dma.done %s364, 256
        $region56: #{tgcn_forward.1} parent=47 // pred_fallthru
          _
        // Predicated region
        $region57: #{tgcn_forward.1} parent=47 // pred_check
          %p372 = pneg %p113
        $region58: #{tgcn_forward.1} parent=47 // pred_check_branch
          %374 = sbr.rel (%p372) target = $region60
        $region59: #{tgcn_forward.1} parent=47 // pred_region
          %375 = dma.done [#allocation9], 384
        $region60: #{tgcn_forward.1} parent=47 // pred_fallthru
          _
        // Predicated region
        $region61: #{tgcn_forward.1} parent=47 // pred_check
          %p376 = pneg %p134
        $region62: #{tgcn_forward.1} parent=47 // pred_check_branch
          %378 = sbr.rel (%p376) target = $region64
        $region63: #{tgcn_forward.1} parent=47 // pred_region
          %379 = dma.done [#allocation12], 16
        $region64: #{tgcn_forward.1} parent=47 // pred_fallthru
          _
        // Predicated region
        $region65: #{tgcn_forward.1} parent=47 // pred_check
          %p380 = pneg %p155
        $region66: #{tgcn_forward.1} parent=47 // pred_check_branch
          %382 = sbr.rel (%p380) target = $region68
        $region67: #{tgcn_forward.1} parent=47 // pred_region
          %383 = dma.done [#allocation12], 256
        $region68: #{tgcn_forward.1} parent=47 // pred_fallthru
          _
        // Predicated region
        $region69: #{tgcn_forward.1} parent=47 // pred_check
          %p384 = pneg %p176
        $region70: #{tgcn_forward.1} parent=47 // pred_check_branch
          %386 = sbr.rel (%p384) target = $region72
        $region71: #{tgcn_forward.1} parent=47 // pred_region
          %387 = dma.done [#allocation15], 16
        $region72: #{tgcn_forward.1} parent=47 // pred_fallthru
          _
        // Predicated region
        $region73: #{tgcn_forward.1} parent=47 // pred_check
          %p388 = pneg %p197
        $region74: #{tgcn_forward.1} parent=47 // pred_check_branch
          %390 = sbr.rel (%p388) target = $region76
        $region75: #{tgcn_forward.1} parent=47 // pred_region
          %391 = dma.done [#allocation15], 16
        $region76: #{tgcn_forward.1} parent=47 // pred_fallthru
          _
        %s392 = sand.u32 %s51, 1
        %s393 = scalar_lea.sflag [#allocation6], %s392
        %s394 = sand.u32 %s51, 1
        %s395 = smul.addr %s394, 32
        %s396 = scalar_lea.vmem [#allocation5], %s395
        %p397 = pneg %p64
        %p398 = pneg %p61
        %s399 = sand.u32 %s29, 1
        %s400 = scalar_lea.sflag [#allocation9], %s399
        %s401 = sand.u32 %s79, 1
        %s402 = smul.addr %s401, 16
        %s403 = scalar_lea.vmem [#allocation8], %s402
        %p404 = pneg %p92
        %p405 = pneg %p89
        %p406 = pneg %p113
        %p407 = pneg %p110
        %p408 = pneg %p134
        %p409 = pneg %p131
        %p410 = pneg %p155
        %p411 = pneg %p152
        %p412 = pneg %p176
        %p413 = pneg %p173
        %p414 = pneg %p197
        %p415 = pneg %p194
        %p416 = pneg %p223
        %p417 = pneg %p220
        %s418 = sand.u32 %s210, 1
        %s419 = scalar_lea.sflag [#allocation7], %s418
        %s420 = sand.u32 %s210, 1
        %s421 = smul.addr %s420, 32
        %s422 = scalar_lea.vmem [#allocation17], %s421
        %p424 = scmp.eq.s32.totalorder %s34, 0
        // Predicated region
        $region77: #{tgcn_forward.1} parent=47 // pred_check
          %p425 = pneg %p424
        $region78: #{tgcn_forward.1} parent=47 // pred_check_branch
          %427 = sbr.rel (%p425) target = $region80
        $region79: #{tgcn_forward.1} parent=47 // pred_region
          %vm428 = vcmask 130048
          %429 = vst.msk [vmem:[#allocation2] sm:$0xff] %vm428, 0.0
          %430 = vst.msk [vmem:[#allocation2 + $0x8] sm:$0xff] %vm428, 0.0
          %431 = vst.msk [vmem:[#allocation2 + $0x10] sm:$0xff] %vm428, 0.0
          %432 = vst.msk [vmem:[#allocation2 + $0x18] sm:$0xff] %vm428, 0.0
        $region80: #{tgcn_forward.1} parent=47 // pred_fallthru
          _
        %v433 = vld [vmem:[%s367] sm:$0xf]
        %v434 = vld [vmem:[%s367 + $0x4] sm:$0xf]
        %v435 = vld [vmem:[%s367 + $0x8] sm:$0xf]
        %v436 = vld [vmem:[%s367 + $0xc] sm:$0xf]
        %v437 = vld [vmem:[%s358] sm:$0xff]
        %v438 = vld [vmem:[%s358 + $0x8] sm:$0xff]
        %v439 = vld [vmem:[%s358 + $0x10] sm:$0xff]
        %v440 = vld [vmem:[%s358 + $0x18] sm:$0xff]
        %v441 = vld [vmem:[#allocation2] sm:$0xff]
        %v442 = vld [vmem:[#allocation2 + $0x8] sm:$0xff]
        %v443 = vld [vmem:[#allocation2 + $0x10] sm:$0xff]
        %v444 = vld [vmem:[#allocation2 + $0x18] sm:$0xff]
        %449 = vrot.lane.b32.xlu0 %v437, 16
        %v450 = vpop.permute.xlu0 %449
        %451 = vrot.lane.b32.xlu0 %v438, 16
        %v452 = vpop.permute.xlu0 %451
        %453 = vrot.lane.b32.xlu0 %v439, 16
        %v454 = vpop.permute.xlu0 %453
        %455 = vrot.lane.b32.xlu0 %v440, 16
        %v456 = vpop.permute.xlu0 %455
        %vm461 = vcmask 130048
        %v462 = vsel %vm461, %v441, %v450
        %v463 = vsel %vm461, %v442, %v452
        %v464 = vsel %vm461, %v443, %v454
        %v465 = vsel %vm461, %v444, %v456
        %v466 = vpack.c.bf16 %v463, %v462
        %v467 = vpack.c.bf16 %v465, %v464
        %v472 = vunpack.c.l.b16 %v433
        %v473 = vunpack.c.l.b16 %v434
        %v474 = vunpack.c.l.b16 %v435
        %v475 = vunpack.c.l.b16 %v436
        %v476 = vpack.c.b16 %v473, %v472
        %v477 = vpack.c.b16 %v475, %v474
        %vm478 = vcmask 261120
        %v480 = vsel %vm478, %v476, 0
        %v483 = vsel %vm478, %v477, 0
        %485 = vmatprep.subr.bf16.mxu0 0
        %486 = vmatpush1.bf16.msra.mxu0 %v466
        %487 = vmatprep.subr.bf16.mxu0 0
        %488 = vmatpush1.bf16.msra.mxu0 %v467
        %489 = vmatprep.subr.bf16.mxu0 0
        %490 = vmatpush1.bf16.msra.mxu0 0
        %491 = vmatprep.subr.bf16.mxu0 0
        %492 = vmatpush1.bf16.msra.mxu0 0
        %493 = vmatprep.subr.bf16.mxu0 0
        %494 = vmatpush1.bf16.msra.mxu0 0
        %495 = vmatprep.subr.bf16.mxu0 0
        %496 = vmatpush1.bf16.msra.mxu0 0
        %497 = vmatprep.subr.bf16.mxu0 0
        %498 = vmatpush1.bf16.msra.mxu0 0
        %499 = vmatprep.subr.bf16.mxu0 0
        %500 = vmatpush1.bf16.msra.mxu0 0
        %501 = vmatprep.subr.bf16.mxu0 0
        %502 = vmatpush1.bf16.msra.mxu0 0
        %503 = vmatprep.subr.bf16.mxu0 0
        %504 = vmatpush1.bf16.msra.mxu0 0
        %505 = vmatprep.subr.bf16.mxu0 0
        %506 = vmatpush1.bf16.msra.mxu0 0
        %507 = vmatprep.subr.bf16.mxu0 0
        %508 = vmatpush1.bf16.msra.mxu0 0
        %509 = vmatprep.subr.bf16.mxu0 0
        %510 = vmatpush1.bf16.msra.mxu0 0
        %511 = vmatprep.subr.bf16.mxu0 0
        %512 = vmatpush1.bf16.msra.mxu0 0
        %513 = vmatprep.subr.bf16.mxu0 0
        %514 = vmatpush1.bf16.msra.mxu0 0
        %515 = vmatprep.subr.bf16.mxu0 0
        %516 = vmatpush1.bf16.msra.mxu0 0
        %517 = vmatprep.mubr.bf16.mxu0 0
        %518 = vmatmul.mubr.bf16.gmra.mrb[0].mxu0 %v480
        %v519 = vpop.f32.mrb[0].mxu0
        %v520 = vadd.f32 0.0, %v519
        %v521 = vpop.f32.mrb[0].mxu0
        %v522 = vpop.f32.mrb[0].mxu0
        %v523 = vadd.f32 0.0, %v522
        %v524 = vpop.f32.mrb[0].mxu0
        %525 = vmatprep.mubr.bf16.mxu0 0
        %526 = vmatmul.mubr.bf16.gmra.mrb[0].mxu0 %v483
        %v527 = vpop.f32.mrb[0].mxu0
        %v528 = vadd.f32 0.0, %v527
        %v529 = vpop.f32.mrb[0].mxu0
        %v530 = vpop.f32.mrb[0].mxu0
        %v531 = vadd.f32 0.0, %v530
        %v532 = vpop.f32.mrb[0].mxu0
        %533 = vdwg.mxu0
        %v534 = vld [vmem:[#allocation10] sm:$0xff]
        %v535 = vld [vmem:[#allocation10 + $0x8] sm:$0xff]
        %v536 = vld [vmem:[#allocation10 + $0x10] sm:$0x1]
        %v537 = vld [vmem:[#allocation11] sm:$0x1]
        %v539 = vlaneseq
        %v540 = vshrl.u32 %v539, 7
        %v541 = vsub.s32 0, %v540
        %v542 = vrot.slane %v537, %v541
        %vm544 = vcmask 138240
        %v546 = vsel %vm544, %v520, 0
        %v549 = vsel %vm544, %v523, 0
        %v552 = vsel %vm544, %v528, 0
        %v555 = vsel %vm544, %v531, 0
        %vm557 = vcmask 1040384
        %v559 = vsel %vm557, %v536, 0
        %561 = vmatprep.subr.mxu0 0.0
        %562 = vmatpush1.msra.mxu0 %v534
        %563 = vmatprep.subr.mxu0 0.0
        %564 = vmatpush1.msra.mxu0 %v535
        %565 = vmatprep.subr.mxu0 0.0
        %566 = vmatpush1.msra.mxu0 %v559
        %567 = vmatprep.subr.mxu0 0.0
        %568 = vmatpush1.msra.mxu0 0.0
        %569 = vmatprep.subr.mxu0 0.0
        %570 = vmatpush1.msra.mxu0 0.0
        %571 = vmatprep.subr.mxu0 0.0
        %572 = vmatpush1.msra.mxu0 0.0
        %573 = vmatprep.subr.mxu0 0.0
        %574 = vmatpush1.msra.mxu0 0.0
        %575 = vmatprep.subr.mxu0 0.0
        %576 = vmatpush1.msra.mxu0 0.0
        %577 = vmatprep.subr.mxu0 0.0
        %578 = vmatpush1.msra.mxu0 0.0
        %579 = vmatprep.subr.mxu0 0.0
        %580 = vmatpush1.msra.mxu0 0.0
        %581 = vmatprep.subr.mxu0 0.0
        %582 = vmatpush1.msra.mxu0 0.0
        %583 = vmatprep.subr.mxu0 0.0
        %584 = vmatpush1.msra.mxu0 0.0
        %585 = vmatprep.subr.mxu0 0.0
        %586 = vmatpush1.msra.mxu0 0.0
        %587 = vmatprep.subr.mxu0 0.0
        %588 = vmatpush1.msra.mxu0 0.0
        %589 = vmatprep.subr.mxu0 0.0
        %590 = vmatpush1.msra.mxu0 0.0
        %591 = vmatprep.subr.mxu0 0.0
        %592 = vmatpush1.msra.mxu0 0.0
        %593 = vmatprep.subr.mxu0 0.0
        %594 = vmatpush1.msra.mxu0 0.0
        %595 = vmatprep.subr.mxu0 0.0
        %596 = vmatpush1.msra.mxu0 0.0
        %597 = vmatprep.subr.mxu0 0.0
        %598 = vmatpush1.msra.mxu0 0.0
        %599 = vmatprep.subr.mxu0 0.0
        %600 = vmatpush1.msra.mxu0 0.0
        %601 = vmatprep.subr.mxu0 0.0
        %602 = vmatpush1.msra.mxu0 0.0
        %603 = vmatprep.subr.mxu0 0.0
        %604 = vmatpush1.msra.mxu0 0.0
        %605 = vmatprep.subr.mxu0 0.0
        %606 = vmatpush1.msra.mxu0 0.0
        %607 = vmatprep.subr.mxu0 0.0
        %608 = vmatpush1.msra.mxu0 0.0
        %609 = vmatprep.subr.mxu0 0.0
        %610 = vmatpush1.msra.mxu0 0.0
        %611 = vmatprep.subr.mxu0 0.0
        %612 = vmatpush1.msra.mxu0 0.0
        %613 = vmatprep.subr.mxu0 0.0
        %614 = vmatpush1.msra.mxu0 0.0
        %615 = vmatprep.subr.mxu0 0.0
        %616 = vmatpush1.msra.mxu0 0.0
        %617 = vmatprep.subr.mxu0 0.0
        %618 = vmatpush1.msra.mxu0 0.0
        %619 = vmatprep.subr.mxu0 0.0
        %620 = vmatpush1.msra.mxu0 0.0
        %621 = vmatprep.subr.mxu0 0.0
        %622 = vmatpush1.msra.mxu0 0.0
        %623 = vmatprep.subr.mxu0 0.0
        %624 = vmatpush1.msra.mxu0 0.0
        %625 = vmatprep.mubr.f32.mxu0 0.0
        %626 = vmatmul.mubr.f32.gmra.mrb[0].mxu0 %v546
        %v627 = vpop.f32.mrb[0].mxu0
        %v628 = vadd.f32 %v542, %v627
        %v629 = vpop.f32.mrb[0].mxu0
        %630 = vmatprep.mubr.f32.mxu0 0.0
        %631 = vmatmul.mubr.f32.gmra.mrb[0].mxu0 %v549
        %v632 = vpop.f32.mrb[0].mxu0
        %v633 = vadd.f32 %v542, %v632
        %v634 = vpop.f32.mrb[0].mxu0
        %635 = vmatprep.mubr.f32.mxu0 0.0
        %636 = vmatmul.mubr.f32.gmra.mrb[0].mxu0 %v552
        %v637 = vpop.f32.mrb[0].mxu0
        %v638 = vadd.f32 %v542, %v637
        %v639 = vpop.f32.mrb[0].mxu0
        %640 = vmatprep.mubr.f32.mxu0 0.0
        %641 = vmatmul.mubr.f32.gmra.mrb[0].mxu0 %v555
        %v642 = vpop.f32.mrb[0].mxu0
        %v643 = vadd.f32 %v542, %v642
        %v644 = vpop.f32.mrb[0].mxu0
        %645 = vdwg.mxu0
        %v646 = vxor.u32 %v628, 2147483648
        %v647 = vxor.u32 %v633, 2147483648
        %v648 = vxor.u32 %v638, 2147483648
        %v649 = vxor.u32 %v643, 2147483648
        %v650 = vmul.f32 %v646, 1.442695
        %v651 = vpow.pop %v650
        %v652 = vmul.f32 %v647, 1.442695
        %v653 = vpow.pop %v652
        %v654 = vmul.f32 %v648, 1.442695
        %v655 = vpow.pop %v654
        %v656 = vmul.f32 %v649, 1.442695
        %v657 = vpow.pop %v656
        %v658 = vadd.f32 %v651, 1.0
        %v659 = vadd.f32 %v653, 1.0
        %v660 = vadd.f32 %v655, 1.0
        %v661 = vadd.f32 %v657, 1.0
        %v662 = vrcp.pop %v658
        %v663 = vmul.f32 1.0, %v662
        %v664 = vrcp.pop %v659
        %v665 = vmul.f32 1.0, %v664
        %v666 = vrcp.pop %v660
        %v667 = vmul.f32 1.0, %v666
        %v668 = vrcp.pop %v661
        %v669 = vmul.f32 1.0, %v668
        %670 = vst [vmem:[#allocation3] ss:$2 sm:$0xff] %v663
        %s671 = scalar_lea.vmem [#allocation3], 16
        %672 = vst [vmem:[%s671] ss:$2 sm:$0xff] %v665
        %675 = vrot.lane.b32.xlu0 %v663, 112
        %v676 = vpop.permute.xlu0 %675
        %677 = vrot.lane.b32.xlu0 %v665, 112
        %v678 = vpop.permute.xlu0 %677
        %s681 = scalar_lea.vmem [#allocation3], 1
        %682 = vst [vmem:[%s681] ss:$2 sm:$0xff] %v676
        %s683 = scalar_lea.vmem [#allocation3], 17
        %684 = vst [vmem:[%s683] ss:$2 sm:$0xff] %v678
        %685 = vst [vmem:[#allocation4] ss:$2 sm:$0xff] %v667
        %s686 = scalar_lea.vmem [#allocation4], 16
        %687 = vst [vmem:[%s686] ss:$2 sm:$0xff] %v669
        %690 = vrot.lane.b32.xlu0 %v667, 112
        %v691 = vpop.permute.xlu0 %690
        %692 = vrot.lane.b32.xlu0 %v669, 112
        %v693 = vpop.permute.xlu0 %692
        %s696 = scalar_lea.vmem [#allocation4], 1
        %697 = vst [vmem:[%s696] ss:$2 sm:$0xff] %v691
        %s698 = scalar_lea.vmem [#allocation4], 17
        %699 = vst [vmem:[%s698] ss:$2 sm:$0xff] %v693
        %v700 = vld [vmem:[#allocation3] sm:$0xff]
        %v701 = vld [vmem:[#allocation3 + $0x8] sm:$0xff]
        %v702 = vld [vmem:[#allocation3 + $0x10] sm:$0xff]
        %v703 = vld [vmem:[#allocation3 + $0x18] sm:$0xff]
        %v704 = vld [vmem:[#allocation4] sm:$0xff]
        %v705 = vld [vmem:[#allocation4 + $0x8] sm:$0xff]
        %v706 = vld [vmem:[#allocation4 + $0x10] sm:$0xff]
        %v707 = vld [vmem:[#allocation4 + $0x18] sm:$0xff]
        %v708 = vmul.f32 %v700, %v441
        %v709 = vmul.f32 %v701, %v442
        %v710 = vmul.f32 %v702, %v443
        %v711 = vmul.f32 %v703, %v444
        %v712 = vpack.c.bf16 %v709, %v708
        %v713 = vpack.c.bf16 %v711, %v710
        %714 = vmatprep.subr.bf16.mxu0 0
        %715 = vmatpush1.bf16.msra.mxu0 %v712
        %716 = vmatprep.subr.bf16.mxu0 0
        %717 = vmatpush1.bf16.msra.mxu0 %v713
        %718 = vmatprep.subr.bf16.mxu0 0
        %719 = vmatpush1.bf16.msra.mxu0 0
        %720 = vmatprep.subr.bf16.mxu0 0
        %721 = vmatpush1.bf16.msra.mxu0 0
        %722 = vmatprep.subr.bf16.mxu0 0
        %723 = vmatpush1.bf16.msra.mxu0 0
        %724 = vmatprep.subr.bf16.mxu0 0
        %725 = vmatpush1.bf16.msra.mxu0 0
        %726 = vmatprep.subr.bf16.mxu0 0
        %727 = vmatpush1.bf16.msra.mxu0 0
        %728 = vmatprep.subr.bf16.mxu0 0
        %729 = vmatpush1.bf16.msra.mxu0 0
        %730 = vmatprep.subr.bf16.mxu0 0
        %731 = vmatpush1.bf16.msra.mxu0 0
        %732 = vmatprep.subr.bf16.mxu0 0
        %733 = vmatpush1.bf16.msra.mxu0 0
        %734 = vmatprep.subr.bf16.mxu0 0
        %735 = vmatpush1.bf16.msra.mxu0 0
        %736 = vmatprep.subr.bf16.mxu0 0
        %737 = vmatpush1.bf16.msra.mxu0 0
        %738 = vmatprep.subr.bf16.mxu0 0
        %739 = vmatpush1.bf16.msra.mxu0 0
        %740 = vmatprep.subr.bf16.mxu0 0
        %741 = vmatpush1.bf16.msra.mxu0 0
        %742 = vmatprep.subr.bf16.mxu0 0
        %743 = vmatpush1.bf16.msra.mxu0 0
        %744 = vmatprep.subr.bf16.mxu0 0
        %745 = vmatpush1.bf16.msra.mxu0 0
        %746 = vmatprep.mubr.bf16.mxu0 0
        %747 = vmatmul.mubr.bf16.gmra.mrb[0].mxu0 %v480
        %v748 = vpop.f32.mrb[0].mxu0
        %v749 = vadd.f32 0.0, %v748
        %v750 = vpop.f32.mrb[0].mxu0
        %v751 = vpop.f32.mrb[0].mxu0
        %v752 = vadd.f32 0.0, %v751
        %v753 = vpop.f32.mrb[0].mxu0
        %754 = vmatprep.mubr.bf16.mxu0 0
        %755 = vmatmul.mubr.bf16.gmra.mrb[0].mxu0 %v483
        %v756 = vpop.f32.mrb[0].mxu0
        %v757 = vadd.f32 0.0, %v756
        %v758 = vpop.f32.mrb[0].mxu0
        %v759 = vpop.f32.mrb[0].mxu0
        %v760 = vadd.f32 0.0, %v759
        %v761 = vpop.f32.mrb[0].mxu0
        %762 = vdwg.mxu0
        %v763 = vld [vmem:[#allocation13] sm:$0xff]
        %v764 = vld [vmem:[#allocation13 + $0x8] sm:$0xff]
        %v765 = vld [vmem:[#allocation14] sm:$0x1]
        %766 = vset.pattern.permute.xlu0 16
        %767 = vperm.xlu0 %766, %v520
        %v768 = vpop.permute.xlu0 %767
        %770 = vset.pattern.permute.xlu0 16
        %771 = vperm.xlu0 %770, %v523
        %v772 = vpop.permute.xlu0 %771
        %774 = vset.pattern.permute.xlu0 16
        %775 = vperm.xlu0 %774, %v528
        %v776 = vpop.permute.xlu0 %775
        %778 = vset.pattern.permute.xlu0 16
        %779 = vperm.xlu0 %778, %v531
        %v780 = vpop.permute.xlu0 %779
        %v783 = vlaneseq
        %v784 = vshrl.u32 %v783, 7
        %v785 = vsub.s32 0, %v784
        %v786 = vrot.slane %v765, %v785
        %v788 = vmul.f32 %v768, %v786
        %v789 = vmul.f32 %v772, %v786
        %v790 = vmul.f32 %v776, %v786
        %v791 = vmul.f32 %v780, %v786
        %v793 = vsel %vm461, %v749, 0
        %v796 = vsel %vm461, %v752, 0
        %v799 = vsel %vm461, %v757, 0
        %v802 = vsel %vm461, %v760, 0
        %804 = vmatprep.subr.mxu0 0.0
        %805 = vmatpush1.msra.mxu0 %v763
        %806 = vmatprep.subr.mxu0 0.0
        %807 = vmatpush1.msra.mxu0 %v764
        %808 = vmatprep.subr.mxu0 0.0
        %809 = vmatpush1.msra.mxu0 0.0
        %810 = vmatprep.subr.mxu0 0.0
        %811 = vmatpush1.msra.mxu0 0.0
        %812 = vmatprep.subr.mxu0 0.0
        %813 = vmatpush1.msra.mxu0 0.0
        %814 = vmatprep.subr.mxu0 0.0
        %815 = vmatpush1.msra.mxu0 0.0
        %816 = vmatprep.subr.mxu0 0.0
        %817 = vmatpush1.msra.mxu0 0.0
        %818 = vmatprep.subr.mxu0 0.0
        %819 = vmatpush1.msra.mxu0 0.0
        %820 = vmatprep.subr.mxu0 0.0
        %821 = vmatpush1.msra.mxu0 0.0
        %822 = vmatprep.subr.mxu0 0.0
        %823 = vmatpush1.msra.mxu0 0.0
        %824 = vmatprep.subr.mxu0 0.0
        %825 = vmatpush1.msra.mxu0 0.0
        %826 = vmatprep.subr.mxu0 0.0
        %827 = vmatpush1.msra.mxu0 0.0
        %828 = vmatprep.subr.mxu0 0.0
        %829 = vmatpush1.msra.mxu0 0.0
        %830 = vmatprep.subr.mxu0 0.0
        %831 = vmatpush1.msra.mxu0 0.0
        %832 = vmatprep.subr.mxu0 0.0
        %833 = vmatpush1.msra.mxu0 0.0
        %834 = vmatprep.subr.mxu0 0.0
        %835 = vmatpush1.msra.mxu0 0.0
        %836 = vmatprep.subr.mxu0 0.0
        %837 = vmatpush1.msra.mxu0 0.0
        %838 = vmatprep.subr.mxu0 0.0
        %839 = vmatpush1.msra.mxu0 0.0
        %840 = vmatprep.subr.mxu0 0.0
        %841 = vmatpush1.msra.mxu0 0.0
        %842 = vmatprep.subr.mxu0 0.0
        %843 = vmatpush1.msra.mxu0 0.0
        %844 = vmatprep.subr.mxu0 0.0
        %845 = vmatpush1.msra.mxu0 0.0
        %846 = vmatprep.subr.mxu0 0.0
        %847 = vmatpush1.msra.mxu0 0.0
        %848 = vmatprep.subr.mxu0 0.0
        %849 = vmatpush1.msra.mxu0 0.0
        %850 = vmatprep.subr.mxu0 0.0
        %851 = vmatpush1.msra.mxu0 0.0
        %852 = vmatprep.subr.mxu0 0.0
        %853 = vmatpush1.msra.mxu0 0.0
        %854 = vmatprep.subr.mxu0 0.0
        %855 = vmatpush1.msra.mxu0 0.0
        %856 = vmatprep.subr.mxu0 0.0
        %857 = vmatpush1.msra.mxu0 0.0
        %858 = vmatprep.subr.mxu0 0.0
        %859 = vmatpush1.msra.mxu0 0.0
        %860 = vmatprep.subr.mxu0 0.0
        %861 = vmatpush1.msra.mxu0 0.0
        %862 = vmatprep.subr.mxu0 0.0
        %863 = vmatpush1.msra.mxu0 0.0
        %864 = vmatprep.subr.mxu0 0.0
        %865 = vmatpush1.msra.mxu0 0.0
        %866 = vmatprep.subr.mxu0 0.0
        %867 = vmatpush1.msra.mxu0 0.0
        %868 = vmatprep.mubr.f32.mxu0 0.0
        %869 = vmatmul.mubr.f32.gmra.mrb[0].mxu0 %v793
        %v870 = vpop.f32.mrb[0].mxu0
        %v871 = vadd.f32 %v788, %v870
        %v872 = vpop.f32.mrb[0].mxu0
        %873 = vmatprep.mubr.f32.mxu0 0.0
        %874 = vmatmul.mubr.f32.gmra.mrb[0].mxu0 %v796
        %v875 = vpop.f32.mrb[0].mxu0
        %v876 = vadd.f32 %v789, %v875
        %v877 = vpop.f32.mrb[0].mxu0
        %878 = vmatprep.mubr.f32.mxu0 0.0
        %879 = vmatmul.mubr.f32.gmra.mrb[0].mxu0 %v799
        %v880 = vpop.f32.mrb[0].mxu0
        %v881 = vadd.f32 %v790, %v880
        %v882 = vpop.f32.mrb[0].mxu0
        %883 = vmatprep.mubr.f32.mxu0 0.0
        %884 = vmatmul.mubr.f32.gmra.mrb[0].mxu0 %v802
        %v885 = vpop.f32.mrb[0].mxu0
        %v886 = vadd.f32 %v791, %v885
        %v887 = vpop.f32.mrb[0].mxu0
        %888 = vdwg.mxu0
        %v889 = vld [vmem:[#allocation16] sm:$0x1]
        %v891 = vlaneseq
        %v892 = vshrl.u32 %v891, 7
        %v893 = vsub.s32 0, %v892
        %v894 = vrot.slane %v889, %v893
        %v896 = vadd.f32 %v871, %v894
        %v897 = vadd.f32 %v876, %v894
        %v898 = vadd.f32 %v881, %v894
        %v899 = vadd.f32 %v886, %v894
        %v900 = vtanh.pop %v896
        %v901 = vtanh.pop %v897
        %v902 = vtanh.pop %v898
        %v903 = vtanh.pop %v899
        %v904 = vmul.f32 %v704, %v441
        %v905 = vmul.f32 %v705, %v442
        %v906 = vmul.f32 %v706, %v443
        %v907 = vmul.f32 %v707, %v444
        %v908 = vsub.f32 1.0, %v704
        %v909 = vsub.f32 1.0, %v705
        %v910 = vsub.f32 1.0, %v706
        %v911 = vsub.f32 1.0, %v707
        %v912 = vmul.f32 %v908, %v900
        %v913 = vmul.f32 %v909, %v901
        %v914 = vmul.f32 %v910, %v902
        %v915 = vmul.f32 %v911, %v903
        %v916 = vadd.f32 %v904, %v912
        %v917 = vadd.f32 %v905, %v913
        %v918 = vadd.f32 %v906, %v914
        %v919 = vadd.f32 %v907, %v915
        %920 = vst.msk [vmem:[#allocation2] sm:$0xff] %vm461, %v916
        %921 = vst.msk [vmem:[#allocation2 + $0x8] sm:$0xff] %vm461, %v917
        %922 = vst.msk [vmem:[#allocation2 + $0x10] sm:$0xff] %vm461, %v918
        %923 = vst.msk [vmem:[#allocation2 + $0x18] sm:$0xff] %vm461, %v919
        %p924 = scmp.eq.s32.totalorder %s34, 7
        // Predicated region
        $region81: #{tgcn_forward.1} parent=47 // pred_check
          %p925 = pneg %p924
        $region82: #{tgcn_forward.1} parent=47 // pred_check_branch
          %927 = sbr.rel (%p925) target = $region84
        $region83: #{tgcn_forward.1} parent=47 // pred_region
          %928 = vst.msk [vmem:[%s422] sm:$0xff] %vm461, %v916
          %929 = vst.msk [vmem:[%s422 + $0x8] sm:$0xff] %vm461, %v917
          %930 = vst.msk [vmem:[%s422 + $0x10] sm:$0xff] %vm461, %v918
          %931 = vst.msk [vmem:[%s422 + $0x18] sm:$0xff] %vm461, %v919
        $region84: #{tgcn_forward.1} parent=47 // pred_fallthru
          _
        %s932 = sand.u32 %s210, 1
        %s933 = scalar_lea.sflag [#allocation7], %s932
        %s934 = sand.u32 %s210, 1
        %s935 = smul.addr %s934, 32
        %s936 = scalar_lea.vmem [#allocation17], %s935
        // Predicated region
        $region85: #{tgcn_forward.1} parent=47 // pred_check
          %p937 = pneg %p220
        $region86: #{tgcn_forward.1} parent=47 // pred_check_branch
          %939 = sbr.rel (%p937) target = $region88
        $region87: #{tgcn_forward.1} parent=47 // pred_region
          %s941 = ssub.s32 512, 512
          %942 = vsyncadd %s933, %s941
          %s943 = smul.addr %s33, 4
          %s944 = smul.addr %s943, 128
          %s945 = scalar_lea.hbm %s7, %s944
          %s946 = sshll.u32 %s936, 4
          %s947 = int_to_ptr.vmem [resolvable:$true] %s946
          %952 = dma.vmem_to_hbm [thread:$0]  %s947, 512, %s945, %s933, 128, 128, 8
        $region88: #{tgcn_forward.1} parent=47 // pred_fallthru
          _
      $region48: #{tgcn_forward.1} parent=5 // pred_fallthru
        _
      %p953 = scmp.le.s32.totalorder 2, %s24
      // Predicated region
      $region89: #{tgcn_forward.1} parent=5 // pred_check
        %p954 = pneg %p953
      $region90: #{tgcn_forward.1} parent=5 // pred_check_branch
        %956 = sbr.rel (%p954) target = $region92
      $region91: #{tgcn_forward.1} parent=5 // pred_region
        %s957 = ssub.s32 %s24, 2
        // Predicated region
        $region93: #{tgcn_forward.1} parent=91 // pred_check
          %p958 = pneg %p226
        $region94: #{tgcn_forward.1} parent=91 // pred_check_branch
          %960 = sbr.rel (%p958) target = $region96
        $region95: #{tgcn_forward.1} parent=91 // pred_region
          %s961 = sand.u32 %s211, 1
          %s962 = scalar_lea.sflag [#allocation7], %s961
          %s963 = sand.u32 %s211, 1
          %s964 = smul.addr %s963, 32
          %s965 = scalar_lea.vmem [#allocation17], %s964
          %966 = dma.done %s962, 512
        $region96: #{tgcn_forward.1} parent=91 // pred_fallthru
          _
      $region92: #{tgcn_forward.1} parent=5 // pred_fallthru
        _
    $region6: #{tgcn_forward.1} parent=1 // loop_footer
      %s28 = sadd.s32 1, %s24
    $region7: #{tgcn_forward.1} parent=1 // loop_footer_branch
      %23 = sbr.rel target = $region3
    $region8: #{tgcn_forward.1} parent=1 // loop_exit
      _
    %967 = vsyncpa [#allocation6], 1
    %s968 = scalar_lea.sflag [#allocation6], 1
    %969 = vsyncpa %s968, 1
    %970 = vsyncpa [#allocation9], 1
    %s971 = scalar_lea.sflag [#allocation9], 1
    %972 = vsyncpa %s971, 1
    %973 = vsyncpa [#allocation12], 1
    %974 = vsyncpa [#allocation15], 1
    %975 = vsyncpa [#allocation7], 1
    %s976 = scalar_lea.sflag [#allocation7], 1
    %977 = vsyncpa %s976, 1

</llo_original>
